<compile_context>
chip_gen: v7x
topology: tpu7x:2x2x1
jax: 0.10.0
libtpu: 0.0.40
codegen_flags: <defaults>
</compile_context>

<pallas_src>
import functools

import jax
import jax.numpy as jnp
from jax.experimental import pallas as pl
from jax.experimental.pallas import tpu as pltpu


def _vmem_capacity_bytes():
    """Physical VMEM size; conservative (v7x-sized) fallback if unavailable."""
    try:
        return int(pltpu.get_tpu_info().vmem_capacity_bytes)
    except Exception:
        return 64 << 20


def _pick_tile(n_pixels, n_classes, vmem_bytes):
    """Pixels per grid step, lane(128)-aligned.

    ~2 MiB of f32 seg per step on 128 MiB VMEM parts (v5e/v6e), ~1 MiB on
    64 MiB parts (v7x).  Accumulators are tiny (C,1), so the per-step VMEM
    footprint is dominated by the double-buffered input blocks + intermediates.
    """
    target_bytes = (2 << 20) if vmem_bytes >= (96 << 20) else (1 << 20)
    max_tile = max(128, ((target_bytes // (4 * n_classes)) // 128) * 128)
    if n_pixels <= max_tile:
        return int(n_pixels)          # single tile; any N allowed (== full dim)
    return int(max_tile)


def _mc_dice_kernel(seg_ref, tgt_ref, inter_ref, den_ref, acc_inter, acc_den,
                    *, alpha, n_pixels, tile, has_tail):
    t = pl.program_id(1)
    n_t = pl.num_programs(1)

    @pl.when(t == 0)
    def _init():
        acc_inter[...] = jnp.zeros_like(acc_inter)
        acc_den[...] = jnp.zeros_like(acc_den)

    # Softmax over the class (sublane) axis, alpha-scaled.  Per-pixel (per-lane)
    # independent, so garbage lanes of a padded tail block never contaminate
    # valid lanes.
    x = seg_ref[0].astype(jnp.float32)                    # (C, tile)
    if alpha != 1.0:
        x = x * jnp.float32(alpha)
    m = jnp.max(x, axis=0, keepdims=True)                 # (1, tile)
    e = jnp.exp(x - m)
    s = jnp.sum(e, axis=0, keepdims=True)                 # (1, tile)
    inv = pl.reciprocal(s, approx=False)                  # 1 recip/pixel (EUP), not C divides
    p = e * inv                                           # (C, tile)

    n_cls = acc_inter.shape[0]
    cls = jax.lax.broadcasted_iota(jnp.int32, (n_cls, tile), 0)
    match = cls == tgt_ref[0].astype(jnp.int32)           # (C, tile) implicit one-hot

    def _accum_full():
        # Unmasked fast path (full tiles).
        inter_val = jnp.where(match, p, jnp.float32(0.0))
        den_val = jnp.where(match, p + 1.0, p)            # p + onehot, fused
        acc_inter[...] += jnp.sum(inter_val, axis=1, keepdims=True)
        acc_den[...] += jnp.sum(den_val, axis=1, keepdims=True)

    def _accum_tail():
        # Masked path: only the last (partial) tile pays for the lane iota and
        # the extra selects.  Selects (not multiplies) keep padded NaNs out.
        lane = jax.lax.broadcasted_iota(jnp.int32, (1, tile), 1)
        valid = (t * tile + lane) < n_pixels               # (1, tile)
        inter_val = jnp.where(valid & match, p, jnp.float32(0.0))
        den_val = jnp.where(valid, jnp.where(match, p + 1.0, p), jnp.float32(0.0))
        acc_inter[...] += jnp.sum(inter_val, axis=1, keepdims=True)
        acc_den[...] += jnp.sum(den_val, axis=1, keepdims=True)

    if has_tail:
        pl.when(t < n_t - 1)(_accum_full)
        pl.when(t == n_t - 1)(_accum_tail)
    else:
        _accum_full()

    @pl.when(t == n_t - 1)
    def _finish():
        inter_ref[0] = acc_inter[...]
        den_ref[0] = acc_den[...]


def _multiclass_dice_partials(seg, target, *, alpha, tile_override=None):
    """Returns per-batch (B, C) intersection and fused-denominator partial sums."""
    B, C, H, W = seg.shape
    N = H * W
    seg3 = seg.reshape(B, C, N)        # metadata-only; keep HBM dtype narrow
    tgt3 = target.reshape(B, 1, N)     # metadata-only; keep caller's int dtype

    vmem_bytes = _vmem_capacity_bytes()
    tile = int(tile_override) if tile_override is not None else _pick_tile(N, C, vmem_bytes)
    num_tiles = pl.cdiv(N, tile)
    has_tail = (N % tile) != 0
    vmem_limit = int(max(32 << 20, min(64 << 20, vmem_bytes - (16 << 20))))

    kernel = functools.partial(
        _mc_dice_kernel, alpha=float(alpha), n_pixels=int(N), tile=int(tile),
        has_tail=bool(has_tail))

    inter_p, den_p = pl.pallas_call(
        kernel,
        out_shape=(jax.ShapeDtypeStruct((B, C, 1), jnp.float32),
                   jax.ShapeDtypeStruct((B, C, 1), jnp.float32)),
        grid_spec=pltpu.PrefetchScalarGridSpec(
            num_scalar_prefetch=0,
            grid=(B, num_tiles),
            in_specs=[
                pl.BlockSpec((1, C, tile), lambda b, t: (b, 0, t)),
                pl.BlockSpec((1, 1, tile), lambda b, t: (b, 0, t)),
            ],
            out_specs=(
                pl.BlockSpec((1, C, 1), lambda b, t: (b, 0, 0)),
                pl.BlockSpec((1, C, 1), lambda b, t: (b, 0, 0)),
            ),
            scratch_shapes=[
                pltpu.VMEM((C, 1), jnp.float32),   # per-class intersection partial
                pltpu.VMEM((C, 1), jnp.float32),   # per-class fused-denominator partial
            ],
        ),
        compiler_params=pltpu.CompilerParams(
            # B axis is parallel-safe (per-b partial outputs, per-b init), so it
            # shards across both TensorCores on v7x; pixel-tile axis accumulates.
            dimension_semantics=("parallel", "arbitrary"),
            vmem_limit_bytes=vmem_limit,
        ),
    )(seg3, tgt3)
    return inter_p[:, :, 0], den_p[:, :, 0]


def multi_class_dice_loss(preds, target, config, weights=None, *, tile_override=None):
    """Pallas implementation of MultiClassDiceLoss.forward(preds, target, weights)."""
    alpha = 20.0 if config['use_prototype'] else 1.0
    num_classes = int(config['num_classes'])
    ignore_index = -1
    if config['dice_ignore_index'] != -1:
        ignore_index = int(config['dice_ignore_index'])

    seg = preds['seg'] if isinstance(preds, dict) else preds

    if weights is None:
        w_eff = jnp.ones((num_classes,), jnp.float32)
    else:
        w_eff = jnp.asarray(weights, jnp.float32)
    count = num_classes
    if 0 <= ignore_index < num_classes:
        w_eff = w_eff.at[ignore_index].set(0.0)
        count -= 1

    inter_b, den_b = _multiclass_dice_partials(
        seg, target, alpha=alpha, tile_override=tile_override)

    # Tiny (B, C) combine in the wrapper (dice / smooth / weights / mean).
    smooth = jnp.float32(1.0)
    inter = jnp.sum(inter_b, axis=0)                      # (C,)
    den = jnp.sum(den_b, axis=0)                          # (C,)
    per_class = 1.0 - 2.0 * (inter + smooth) / (den + smooth)
    return jnp.sum(w_eff * per_class) / jnp.float32(count)


def multi_class_dice_loss_ref(preds, target, config, weights=None):
    """Pure-JAX reference matching the PyTorch forward."""
    alpha = 20.0 if config['use_prototype'] else 1.0
    num_classes = int(config['num_classes'])
    ignore_index = -1
    if config['dice_ignore_index'] != -1:
        ignore_index = int(config['dice_ignore_index'])
    seg = preds['seg'] if isinstance(preds, dict) else preds

    onehot = jax.nn.one_hot(target, num_classes, dtype=jnp.float32)  # (B,H,W,C)
    onehot = jnp.transpose(onehot, (0, 3, 1, 2))                     # (B,C,H,W)
    p = jax.nn.softmax(seg.astype(jnp.float32) * alpha, axis=1)

    smooth = 1.0
    total = jnp.float32(0.0)
    count = 0
    for i in range(num_classes):
        if i == ignore_index:
            continue
        x = p[:, i].ravel()
        tt = onehot[:, i].ravel()
        inter = jnp.sum(x * tt)
        dice = 2.0 * (inter + smooth) / (jnp.sum(x) + jnp.sum(tt) + smooth)
        l = 1.0 - dice
        if weights is not None:
            l = l * weights[i]
        total = total + l
        count += 1
    return total / count


if __name__ == "__main__":
    key = jax.random.PRNGKey(0)
    k1, k2, k3, k4, k5 = jax.random.split(key, 5)

    # Test 1: plain softmax, no ignored class, no weights, single pixel tile.
    B, C, H, W = 2, 4, 16, 16
    seg = jax.random.normal(k1, (B, C, H, W), dtype=jnp.float32)
    target = jax.random.randint(k2, (B, H, W), 0, C, dtype=jnp.int32)
    cfg = {'use_prototype': False, 'num_classes': C, 'dice_ignore_index': -1}
    out = jax.block_until_ready(multi_class_dice_loss(seg, target, cfg))
    ref = jax.block_until_ready(multi_class_dice_loss_ref(seg, target, cfg))
    assert jnp.allclose(out, ref, rtol=1e-5, atol=1e-5), (out, ref)

    # Test 2: prototype scaling (alpha=20), ignored class, per-class weights,
    # B>1, multiple pixel tiles AND a partial tail tile (N=320, tile=128).
    B2, C2, H2, W2 = 2, 5, 16, 20
    seg2 = jax.random.normal(k3, (B2, C2, H2, W2), dtype=jnp.float32)
    target2 = jax.random.randint(k4, (B2, H2, W2), 0, C2, dtype=jnp.int32)
    cfg2 = {'use_prototype': True, 'num_classes': C2, 'dice_ignore_index': 1}
    w = jax.random.uniform(k5, (C2,), dtype=jnp.float32) + 0.5
    out2 = jax.block_until_ready(
        multi_class_dice_loss({'seg': seg2}, target2, cfg2, weights=w,
                              tile_override=128))
    ref2 = jax.block_until_ready(
        multi_class_dice_loss_ref({'seg': seg2}, target2, cfg2, weights=w))
    assert jnp.allclose(out2, ref2, rtol=1e-5, atol=1e-5), (out2, ref2)

    print("KERNEL_OK")
</pallas_src>

<mosaic_0001>
module attributes {stable_mosaic.version = 11 : i64} {
  func.func @_mc_dice_kernel(%arg0: i32, %arg1: i32, %arg2: memref<1x4x256xf32, #tpu.memory_space<vmem>>, %arg3: memref<1x1x256xi32, #tpu.memory_space<vmem>>, %arg4: memref<1x4x1xf32, #tpu.memory_space<vmem>>, %arg5: memref<1x4x1xf32, #tpu.memory_space<vmem>>, %arg6: memref<4x1xf32, #tpu.memory_space<vmem>>, %arg7: memref<4x1xf32, #tpu.memory_space<vmem>>) attributes {dimension_semantics = [#tpu.dimension_semantics<parallel>, #tpu.dimension_semantics<arbitrary>], iteration_bounds = array<i64: 2, 1>, scalar_prefetch = 0 : i64, scratch_operands = 2 : i64, tpu.core_type = #tpu.core_type<tc>, window_params = [{transform_indices = @transform_0, window_bounds = array<i64: 1, 4, 256>}, {transform_indices = @transform_1, window_bounds = array<i64: 1, 1, 256>}, {transform_indices = @transform_2, window_bounds = array<i64: 1, 4, 1>}, {transform_indices = @transform_3, window_bounds = array<i64: 1, 4, 1>}]} {
    %c0_i32 = arith.constant 0 : i32
    %0 = arith.cmpi eq, %arg1, %c0_i32 : i32
    %1 = arith.extui %0 : i1 to i32
    %c0_i32_0 = arith.constant 0 : i32
    %2 = arith.cmpi ne, %1, %c0_i32_0 : i32
    scf.if %2 {
      %cst_21 = arith.constant 0.000000e+00 : f32
      %38 = vector.broadcast %cst_21 : f32 to vector<4x1xf32>
      %c0_22 = arith.constant 0 : index
      %c0_23 = arith.constant 0 : index
      %39 = vector.load %arg6[%c0_22, %c0_23] : memref<4x1xf32, #tpu.memory_space<vmem>>, vector<4x1xf32>
      tpu.vector_store %arg6[%c0_22, %c0_23], %38 {strides = array<i32>} : memref<4x1xf32, #tpu.memory_space<vmem>>, vector<4x1xf32>,
      %cst_24 = arith.constant 0.000000e+00 : f32
      %40 = vector.broadcast %cst_24 : f32 to vector<4x1xf32>
      %c0_25 = arith.constant 0 : index
      %c0_26 = arith.constant 0 : index
      %41 = vector.load %arg7[%c0_25, %c0_26] : memref<4x1xf32, #tpu.memory_space<vmem>>, vector<4x1xf32>
      tpu.vector_store %arg7[%c0_25, %c0_26], %40 {strides = array<i32>} : memref<4x1xf32, #tpu.memory_space<vmem>>, vector<4x1xf32>,
    } else {
    }
    %c0 = arith.constant 0 : index
    %c0_1 = arith.constant 0 : index
    %c0_2 = arith.constant 0 : index
    %3 = vector.load %arg2[%c0, %c0_1, %c0_2] : memref<1x4x256xf32, #tpu.memory_space<vmem>>, vector<1x4x256xf32>
    %4 = vector.shape_cast %3 : vector<1x4x256xf32> to vector<4x256xf32>
    %cst = arith.constant dense<0xFF800000> : vector<256xf32>
    %5 = vector.multi_reduction <maximumf>, %4, %cst [0] : vector<4x256xf32> to vector<256xf32>
    %6 = vector.shape_cast %5 : vector<256xf32> to vector<1x256xf32>
    %7 = vector.broadcast %6 : vector<1x256xf32> to vector<4x256xf32>
    %8 = arith.subf %4, %7 : vector<4x256xf32>
    %9 = math.exp %8 : vector<4x256xf32>
    %cst_3 = arith.constant dense<0.000000e+00> : vector<256xf32>
    %10 = vector.multi_reduction <add>, %9, %cst_3 [0] : vector<4x256xf32> to vector<256xf32>
    %11 = vector.shape_cast %10 : vector<256xf32> to vector<1x256xf32>
    %12 = tpu.reciprocal %11 : vector<1x256xf32> -> vector<1x256xf32>
    %13 = vector.broadcast %12 : vector<1x256xf32> to vector<4x256xf32>
    %14 = arith.mulf %9, %13 : vector<4x256xf32>
    %15 = tpu.iota {dimensions = array<i32: 0>} : vector<4x256xi32>
    %c0_4 = arith.constant 0 : index
    %c0_5 = arith.constant 0 : index
    %c0_6 = arith.constant 0 : index
    %16 = vector.load %arg3[%c0_4, %c0_5, %c0_6] : memref<1x1x256xi32, #tpu.memory_space<vmem>>, vector<1x1x256xi32>
    %17 = vector.shape_cast %16 : vector<1x1x256xi32> to vector<1x256xi32>
    %18 = vector.broadcast %17 : vector<1x256xi32> to vector<4x256xi32>
    %19 = arith.cmpi eq, %15, %18 : vector<4x256xi32>
    %cst_7 = arith.constant 0.000000e+00 : f32
    %20 = vector.broadcast %cst_7 : f32 to vector<4x256xf32>
    %21 = arith.select %19, %14, %20 : vector<4x256xi1>, vector<4x256xf32>
    %cst_8 = arith.constant 1.000000e+00 : f32
    %22 = vector.broadcast %cst_8 : f32 to vector<4x256xf32>
    %23 = arith.addf %14, %22 : vector<4x256xf32>
    %24 = arith.select %19, %23, %14 : vector<4x256xi1>, vector<4x256xf32>
    %c0_9 = arith.constant 0 : index
    %c0_10 = arith.constant 0 : index
    %25 = vector.load %arg6[%c0_9, %c0_10] : memref<4x1xf32, #tpu.memory_space<vmem>>, vector<4x1xf32>
    %cst_11 = arith.constant dense<0.000000e+00> : vector<4xf32>
    %26 = vector.multi_reduction <add>, %21, %cst_11 [1] : vector<4x256xf32> to vector<4xf32>
    %27 = vector.shape_cast %26 : vector<4xf32> to vector<4x1xf32>
    %28 = arith.addf %25, %27 : vector<4x1xf32>
    %c0_12 = arith.constant 0 : index
    %c0_13 = arith.constant 0 : index
    %29 = vector.load %arg6[%c0_12, %c0_13] : memref<4x1xf32, #tpu.memory_space<vmem>>, vector<4x1xf32>
    tpu.vector_store %arg6[%c0_12, %c0_13], %28 {strides = array<i32>} : memref<4x1xf32, #tpu.memory_space<vmem>>, vector<4x1xf32>,
    %c0_14 = arith.constant 0 : index
    %c0_15 = arith.constant 0 : index
    %30 = vector.load %arg7[%c0_14, %c0_15] : memref<4x1xf32, #tpu.memory_space<vmem>>, vector<4x1xf32>
    %cst_16 = arith.constant dense<0.000000e+00> : vector<4xf32>
    %31 = vector.multi_reduction <add>, %24, %cst_16 [1] : vector<4x256xf32> to vector<4xf32>
    %32 = vector.shape_cast %31 : vector<4xf32> to vector<4x1xf32>
    %33 = arith.addf %30, %32 : vector<4x1xf32>
    %c0_17 = arith.constant 0 : index
    %c0_18 = arith.constant 0 : index
    %34 = vector.load %arg7[%c0_17, %c0_18] : memref<4x1xf32, #tpu.memory_space<vmem>>, vector<4x1xf32>
    tpu.vector_store %arg7[%c0_17, %c0_18], %33 {strides = array<i32>} : memref<4x1xf32, #tpu.memory_space<vmem>>, vector<4x1xf32>,
    %c0_i32_19 = arith.constant 0 : i32
    %35 = arith.cmpi eq, %arg1, %c0_i32_19 : i32
    %36 = arith.extui %35 : i1 to i32
    %c0_i32_20 = arith.constant 0 : i32
    %37 = arith.cmpi ne, %36, %c0_i32_20 : i32
    scf.if %37 {
      %c0_21 = arith.constant 0 : index
      %c0_22 = arith.constant 0 : index
      %38 = vector.load %arg6[%c0_21, %c0_22] : memref<4x1xf32, #tpu.memory_space<vmem>>, vector<4x1xf32>
      %c0_23 = arith.constant 0 : index
      %c0_24 = arith.constant 0 : index
      %c0_25 = arith.constant 0 : index
      %39 = vector.load %arg4[%c0_23, %c0_24, %c0_25] : memref<1x4x1xf32, #tpu.memory_space<vmem>>, vector<1x4x1xf32>
      %40 = vector.shape_cast %39 : vector<1x4x1xf32> to vector<4x1xf32>
      %41 = vector.shape_cast %38 : vector<4x1xf32> to vector<1x4x1xf32>
      tpu.vector_store %arg4[%c0_23, %c0_24, %c0_25], %41 {strides = array<i32>} : memref<1x4x1xf32, #tpu.memory_space<vmem>>, vector<1x4x1xf32>,
      %c0_26 = arith.constant 0 : index
      %c0_27 = arith.constant 0 : index
      %42 = vector.load %arg7[%c0_26, %c0_27] : memref<4x1xf32, #tpu.memory_space<vmem>>, vector<4x1xf32>
      %c0_28 = arith.constant 0 : index
      %c0_29 = arith.constant 0 : index
      %c0_30 = arith.constant 0 : index
      %43 = vector.load %arg5[%c0_28, %c0_29, %c0_30] : memref<1x4x1xf32, #tpu.memory_space<vmem>>, vector<1x4x1xf32>
      %44 = vector.shape_cast %43 : vector<1x4x1xf32> to vector<4x1xf32>
      %45 = vector.shape_cast %42 : vector<4x1xf32> to vector<1x4x1xf32>
      tpu.vector_store %arg5[%c0_28, %c0_29, %c0_30], %45 {strides = array<i32>} : memref<1x4x1xf32, #tpu.memory_space<vmem>>, vector<1x4x1xf32>,
    } else {
    }
    return
  }
  func.func @transform_0(%arg0: i32, %arg1: i32) -> (i32, i32, i32) {
    %c0_i32 = arith.constant 0 : i32
    %c0_i32_0 = arith.constant 0 : i32
    return %arg0, %c0_i32, %arg1 : i32, i32, i32
  }
  func.func @transform_1(%arg0: i32, %arg1: i32) -> (i32, i32, i32) {
    %c0_i32 = arith.constant 0 : i32
    %c0_i32_0 = arith.constant 0 : i32
    return %arg0, %c0_i32, %arg1 : i32, i32, i32
  }
  func.func @transform_2(%arg0: i32, %arg1: i32) -> (i32, i32, i32) {
    %c0_i32 = arith.constant 0 : i32
    %c0_i32_0 = arith.constant 0 : i32
    %c0_i32_1 = arith.constant 0 : i32
    return %arg0, %c0_i32, %c0_i32_0 : i32, i32, i32
  }
  func.func @transform_3(%arg0: i32, %arg1: i32) -> (i32, i32, i32) {
    %c0_i32 = arith.constant 0 : i32
    %c0_i32_0 = arith.constant 0 : i32
    %c0_i32_1 = arith.constant 0 : i32
    return %arg0, %c0_i32, %c0_i32_0 : i32, i32, i32
  }
}

</mosaic_0001>

<llo_original>
// kernel: tpu_custom_call.1
$region0: #{tpu_custom_call.1}
  #allocation0 [shape = 'u32[]', space=smem, size = 0x4, offset = 0x4, fixed_abs, tag = 'smem constant byte address 0x4 - core index']
  #allocation1 [shape = 'u32[144,128]{1,0:T(1,128)}', space=vmem, size = 0x12000, scoped, tag = 'internal scratch']
  #allocation2 [shape = 'f32[4,1]{1,0:T(4,128)}', space=vmem, size = 0x800, scoped, tag = 'scratch operand']
  #allocation3 [shape = 'f32[4,1]{1,0:T(4,128)}', space=vmem, size = 0x800, scoped, tag = 'scratch operand']
  %s0 = inlined_call_operand.hbm [shape: f32[2,4,256], index: 0, kind: input, shape index: {}]
  %s1 = inlined_call_operand.hbm [shape: s32[2,1,256], index: 1, kind: input, shape index: {}]
  %s2 = inlined_call_operand.vmem [shape: f32[2,4,1], index: 2, kind: output, shape index: {0}]
  %s3 = inlined_call_operand.vmem [shape: f32[2,4,1], index: 3, kind: output, shape index: {1}]
  %4 = xla_tuple %s2, %s3
  %s5 = sld [smem:[#allocation0]]
  $region65: #{tpu_custom_call.1} parent=0
    _
  %s7 = ssub.s32 1, %s5
  %s8 = scalar_select 0, %s7, %s5
  $region1: #{tpu_custom_call.1} parent=0
    #allocation4 [shape = 'u8[8192]{0}', space=vmem, size = 0x2000, scoped, tag = 'input window, operand 0']
    #allocation5 [shape = 's32[2]{0}', space=sflag, size = 0x8, scoped, tag = 'scoped memory for tpu_custom_call.1']
    #allocation6 [shape = 'u8[2048]{0}', space=vmem, size = 0x800, scoped, tag = 'input window, operand 1']
    #allocation7 [shape = 's32[2]{0}', space=sflag, size = 0x8, scoped, tag = 'scoped memory for tpu_custom_call.1']
    %9 = vsyncpa [#allocation5], 0
    %s10 = scalar_lea.sflag [#allocation5], 1
    %11 = vsyncpa %s10, 0
    %12 = vsyncpa [#allocation7], 0
    %s13 = scalar_lea.sflag [#allocation7], 1
    %14 = vsyncpa %s13, 0
    loop: start=0, step=1, limit=4
    $region2: #{tpu_custom_call.1} parent=1 // loop_pre_header
      _
    $region3: #{tpu_custom_call.1} parent=1 // loop_header
      %s16 = sphi 0, %s20
      %p17 = scmp.ge.s32.totalorder %s16, 4
      %s23 = sphi 0, %s35
      %s24 = sphi 0, %s31
      %s25 = sphi 0, %s23
      %s26 = sphi 0, %s24
      %s27 = sphi 0, %s25
      %s28 = sphi 0, %s26
      %s40 = sphi 0, %s42
      %s43 = sphi 0, %s40
      %s44 = sphi 0, %s43
      %s60 = sphi 0, %s44
      %s68 = sphi 0, %s70
      %s71 = sphi 0, %s68
      %s72 = sphi 0, %s71
      %s88 = sphi 0, %s72
      %s94 = sphi 0, %s96
      %s97 = sphi 0, %s94
      %s98 = sphi 0, %s97
      %s114 = sphi 0, %s98
      %s120 = sphi 0, %s122
      %s123 = sphi 0, %s120
      %s124 = sphi 0, %s123
      %s140 = sphi 0, %s124
    $region4: #{tpu_custom_call.1} parent=1 // loop_header_branch
      %19 = sbr.rel (%p17) target = $region8
    $region5: #{tpu_custom_call.1} parent=1 // loop_body
      %s21 = ssub.s32 %s16, 1
      %s22 = ssub.s32 %s16, 2
      %s29 = sadd.s32 1, %s24
      %p30 = scmp.ge.s32.totalorder %s29, 1
      %s31 = scalar_select %p30, 0, %s29
      %s32 = sadd.s32 1, %s23
      %s33 = scalar_select %p30, %s32, %s23
      %p34 = scmp.ge.s32.totalorder %s33, 2
      %s35 = scalar_select %p34, 0, %s33
      %s36 = ssub.s32 %s23, %s35
      %s37 = ssub.s32 %s24, %s31
      %s38 = sor.u32 %s36, %s37
      %p39 = scmp.eq.s32.totalorder %s38, 0
      %s41 = sadd.s32 %s40, 1
      %s42 = scalar_select %p39, %s40, %s41
      %p45 = pneg %p39
      %p46 = scmp.eq.s32.totalorder %s16, 1
      %p47 = por %p45, %p46
      %p48 = scmp.ne.s32.totalorder %s40, %s43
      %p49 = scmp.eq.s32.totalorder %s16, 0
      %p50 = por %p48, %p49
      %p51 = scmp.ne.s32.totalorder %s40, %s43
      %p52 = scmp.eq.s32.totalorder %s21, 1
      %p53 = por %p51, %p52
      %p54 = scmp.ne.s32.totalorder %s43, %s44
      %p55 = scmp.eq.s32.totalorder %s21, 0
      %p56 = por %p54, %p55
      %p57 = scmp.ne.s32.totalorder %s43, %s44
      %p58 = scmp.eq.s32.totalorder %s22, 1
      %p59 = por %p57, %p58
      %p61 = scmp.ne.s32.totalorder %s44, %s60
      %p62 = scmp.eq.s32.totalorder %s22, 0
      %p63 = por %p61, %p62
      %s64 = ssub.s32 %s23, %s35
      %s65 = ssub.s32 %s24, %s31
      %s66 = sor.u32 %s64, %s65
      %p67 = scmp.eq.s32.totalorder %s66, 0
      %s69 = sadd.s32 %s68, 1
      %s70 = scalar_select %p67, %s68, %s69
      %p73 = pneg %p67
      %p74 = scmp.eq.s32.totalorder %s16, 1
      %p75 = por %p73, %p74
      %p76 = scmp.ne.s32.totalorder %s68, %s71
      %p77 = scmp.eq.s32.totalorder %s16, 0
      %p78 = por %p76, %p77
      %p79 = scmp.ne.s32.totalorder %s68, %s71
      %p80 = scmp.eq.s32.totalorder %s21, 1
      %p81 = por %p79, %p80
      %p82 = scmp.ne.s32.totalorder %s71, %s72
      %p83 = scmp.eq.s32.totalorder %s21, 0
      %p84 = por %p82, %p83
      %p85 = scmp.ne.s32.totalorder %s71, %s72
      %p86 = scmp.eq.s32.totalorder %s22, 1
      %p87 = por %p85, %p86
      %p89 = scmp.ne.s32.totalorder %s72, %s88
      %p90 = scmp.eq.s32.totalorder %s22, 0
      %p91 = por %p89, %p90
      %s92 = ssub.s32 %s23, %s35
      %p93 = scmp.eq.s32.totalorder %s92, 0
      %s95 = sadd.s32 %s94, 1
      %s96 = scalar_select %p93, %s94, %s95
      %p99 = pneg %p93
      %p100 = scmp.eq.s32.totalorder %s16, 1
      %p101 = por %p99, %p100
      %p102 = scmp.ne.s32.totalorder %s94, %s97
      %p103 = scmp.eq.s32.totalorder %s16, 0
      %p104 = por %p102, %p103
      %p105 = scmp.ne.s32.totalorder %s94, %s97
      %p106 = scmp.eq.s32.totalorder %s21, 1
      %p107 = por %p105, %p106
      %p108 = scmp.ne.s32.totalorder %s97, %s98
      %p109 = scmp.eq.s32.totalorder %s21, 0
      %p110 = por %p108, %p109
      %p111 = scmp.ne.s32.totalorder %s97, %s98
      %p112 = scmp.eq.s32.totalorder %s22, 1
      %p113 = por %p111, %p112
      %p115 = scmp.ne.s32.totalorder %s98, %s114
      %p116 = scmp.eq.s32.totalorder %s22, 0
      %p117 = por %p115, %p116
      %s118 = ssub.s32 %s23, %s35
      %p119 = scmp.eq.s32.totalorder %s118, 0
      %s121 = sadd.s32 %s120, 1
      %s122 = scalar_select %p119, %s120, %s121
      %p125 = pneg %p119
      %p126 = scmp.eq.s32.totalorder %s16, 1
      %p127 = por %p125, %p126
      %p128 = scmp.ne.s32.totalorder %s120, %s123
      %p129 = scmp.eq.s32.totalorder %s16, 0
      %p130 = por %p128, %p129
      %p131 = scmp.ne.s32.totalorder %s120, %s123
      %p132 = scmp.eq.s32.totalorder %s21, 1
      %p133 = por %p131, %p132
      %p134 = scmp.ne.s32.totalorder %s123, %s124
      %p135 = scmp.eq.s32.totalorder %s21, 0
      %p136 = por %p134, %p135
      %p137 = scmp.ne.s32.totalorder %s123, %s124
      %p138 = scmp.eq.s32.totalorder %s22, 1
      %p139 = por %p137, %p138
      %p141 = scmp.ne.s32.totalorder %s124, %s140
      %p142 = scmp.eq.s32.totalorder %s22, 0
      %p143 = por %p141, %p142
      %p144 = scmp.le.s32.totalorder 1, %s16
      %p145 = scmp.lt.s32.totalorder %s16, 3
      %p146 = pnand %p144, %p145
      %p147 = pneg %p146
      // Predicated region
      $region9: #{tpu_custom_call.1} parent=5 // pred_check
        _
      $region10: #{tpu_custom_call.1} parent=5 // pred_check_branch
        %149 = sbr.rel (%p146) target = $region12
      $region11: #{tpu_custom_call.1} parent=5 // pred_region
        %s150 = ssub.s32 %s16, 1
      $region12: #{tpu_custom_call.1} parent=5 // pred_fallthru
        _
      %p151 = scmp.lt.s32.totalorder %s16, 2
      // Predicated region
      $region13: #{tpu_custom_call.1} parent=5 // pred_check
        %p152 = pneg %p151
      $region14: #{tpu_custom_call.1} parent=5 // pred_check_branch
        %154 = sbr.rel (%p152) target = $region16
      $region15: #{tpu_custom_call.1} parent=5 // pred_region
        // Predicated region
        $region17: #{tpu_custom_call.1} parent=15 // pred_check
          %p155 = pneg %p50
        $region18: #{tpu_custom_call.1} parent=15 // pred_check_branch
          %157 = sbr.rel (%p155) target = $region20
        $region19: #{tpu_custom_call.1} parent=15 // pred_region
          %s158 = sand.u32 %s40, 1
          %s159 = scalar_lea.sflag [#allocation5], %s158
          %s160 = sand.u32 %s40, 1
          %s161 = smul.addr %s160, 8
          %s162 = scalar_lea.vmem [#allocation4], %s161
          %s163 = smul.u32 2, %s24
          %s165 = ssub.s32 128, 128
          %166 = vsyncadd %s159, %s165
          %s167 = smul.addr %s23, 2
          %s168 = sadd.s32 %s163, %s167
          %s169 = smul.addr %s168, 64
          %s170 = scalar_lea.hbm %s0, %s169
          %s172 = sshll.u32 %s162, 4
          %s173 = int_to_ptr.vmem [resolvable:$true] %s172
          %175 = dma.hbm_to_vmem [thread:$0]  %s170, 128, %s173, %s159
        $region20: #{tpu_custom_call.1} parent=15 // pred_fallthru
          _
        // Predicated region
        $region21: #{tpu_custom_call.1} parent=15 // pred_check
          %p176 = pneg %p78
        $region22: #{tpu_custom_call.1} parent=15 // pred_check_branch
          %178 = sbr.rel (%p176) target = $region24
        $region23: #{tpu_custom_call.1} parent=15 // pred_region
          %s179 = sand.u32 %s68, 1
          %s180 = scalar_lea.sflag [#allocation7], %s179
          %s181 = sand.u32 %s68, 1
          %s182 = smul.addr %s181, 2
          %s183 = scalar_lea.vmem [#allocation6], %s182
          %s184 = smul.u32 2, %s24
          %s186 = ssub.s32 32, 32
          %187 = vsyncadd %s180, %s186
          %s188 = smul.addr %s23, 2
          %s189 = sadd.s32 %s184, %s188
          %s190 = smul.addr %s189, 16
          %s191 = scalar_lea.hbm %s1, %s190
          %s193 = sshll.u32 %s183, 4
          %s194 = int_to_ptr.vmem [resolvable:$true] %s193
          %196 = dma.hbm_to_vmem [thread:$0]  %s191, 32, %s194, %s180
        $region24: #{tpu_custom_call.1} parent=15 // pred_fallthru
          _
      $region16: #{tpu_custom_call.1} parent=5 // pred_fallthru
        _
      %p197 = scmp.le.s32.totalorder 1, %s16
      %p198 = scmp.lt.s32.totalorder %s16, 3
      %p199 = pnand %p197, %p198
      %p200 = pneg %p199
      // Predicated region
      $region25: #{tpu_custom_call.1} parent=5 // pred_check
        _
      $region26: #{tpu_custom_call.1} parent=5 // pred_check_branch
        %202 = sbr.rel (%p199) target = $region28
      $region27: #{tpu_custom_call.1} parent=5 // pred_region
        %s203 = ssub.s32 %s16, 1
        %s204 = sand.u32 %s43, 1
        %s205 = scalar_lea.sflag [#allocation5], %s204
        %s206 = sand.u32 %s43, 1
        %s207 = smul.addr %s206, 8
        %s208 = scalar_lea.vmem [#allocation4], %s207
        // Predicated region
        $region29: #{tpu_custom_call.1} parent=27 // pred_check
          %p209 = pneg %p56
        $region30: #{tpu_custom_call.1} parent=27 // pred_check_branch
          %211 = sbr.rel (%p209) target = $region32
        $region31: #{tpu_custom_call.1} parent=27 // pred_region
          %212 = dma.done %s205, 128
        $region32: #{tpu_custom_call.1} parent=27 // pred_fallthru
          _
        %s213 = sand.u32 %s71, 1
        %s214 = scalar_lea.sflag [#allocation7], %s213
        %s215 = sand.u32 %s71, 1
        %s216 = smul.addr %s215, 2
        %s217 = scalar_lea.vmem [#allocation6], %s216
        // Predicated region
        $region33: #{tpu_custom_call.1} parent=27 // pred_check
          %p218 = pneg %p84
        $region34: #{tpu_custom_call.1} parent=27 // pred_check_branch
          %220 = sbr.rel (%p218) target = $region36
        $region35: #{tpu_custom_call.1} parent=27 // pred_region
          %221 = dma.done %s214, 32
        $region36: #{tpu_custom_call.1} parent=27 // pred_fallthru
          _
        %s222 = sand.u32 %s43, 1
        %s223 = scalar_lea.sflag [#allocation5], %s222
        %s224 = sand.u32 %s43, 1
        %s225 = smul.addr %s224, 8
        %s226 = scalar_lea.vmem [#allocation4], %s225
        %p227 = pneg %p56
        %p228 = pneg %p53
        %s229 = sand.u32 %s71, 1
        %s230 = scalar_lea.sflag [#allocation7], %s229
        %s231 = sand.u32 %s71, 1
        %s232 = smul.addr %s231, 2
        %s233 = scalar_lea.vmem [#allocation6], %s232
        %p234 = pneg %p84
        %p235 = pneg %p81
        %p236 = pneg %p110
        %p237 = pneg %p107
        %p238 = scmp.lt.s32.totalorder %s25, 1
        %s239 = scalar_select %p238, %s25, 1
        %s240 = smul.addr %s239, 4
        %s241 = scalar_lea.vmem %s2, %s240
        %p242 = pneg %p136
        %p243 = pneg %p133
        %p244 = scmp.lt.s32.totalorder %s25, 1
        %s245 = scalar_select %p244, %s25, 1
        %s246 = smul.addr %s245, 4
        %s247 = scalar_lea.vmem %s3, %s246
        %s248 = smul.u32 2, %s26
        %s249 = smul.u32 2, %s26
        %p250 = scmp.lt.s32.totalorder %s25, 1
        %s251 = scalar_select %p250, %s25, 1
        %s252 = smul.addr %s251, 4
        %s253 = scalar_lea.vmem %s2, %s252
        %p254 = scmp.lt.s32.totalorder %s25, 1
        %s255 = scalar_select %p254, %s25, 1
        %s256 = smul.addr %s255, 4
        %s257 = scalar_lea.vmem %s3, %s256
        %p258 = scmp.eq.s32.totalorder %s26, 0
        // Predicated region
        $region37: #{tpu_custom_call.1} parent=27 // pred_check
          %p259 = pneg %p258
        $region38: #{tpu_custom_call.1} parent=27 // pred_check_branch
          %261 = sbr.rel (%p259) target = $region40
        $region39: #{tpu_custom_call.1} parent=27 // pred_region
          %vm262 = vcmask 3072
          %263 = vst.msk [vmem:[#allocation2] sm:$0xf] %vm262, 0.0
          %264 = vst.msk [vmem:[#allocation3] sm:$0xf] %vm262, 0.0
        $region40: #{tpu_custom_call.1} parent=27 // pred_fallthru
          _
        %v265 = vld [vmem:[%s208] sm:$0xff]
        %v267 = vcombine.high %v265, %v265
        %vm269 = vcmask 1043456
        %v270 = vsel %vm269, %v265, -inf
        %v271 = vrot.slane %v270, 4
        %v272 = vmax.f32 %v270, %v271
        %v273 = vrot.slane %v272, 2
        %v274 = vmax.f32 %v272, %v273
        %v275 = vrot.slane %v274, 1
        %v276 = vmax.f32 %v274, %v275
        %v277 = vsel %vm269, %v267, -inf
        %v278 = vrot.slane %v277, 4
        %v279 = vmax.f32 %v277, %v278
        %v280 = vrot.slane %v279, 2
        %v281 = vmax.f32 %v279, %v280
        %v282 = vrot.slane %v281, 1
        %v283 = vmax.f32 %v281, %v282
        %v286 = vcombine.low %v276, %v283
        %v288 = vsub.f32 %v265, %v286
        %v289 = vmul.f32 %v288, 1.442695
        %v290 = vpow.pop %v289
        %v292 = vcombine.high %v290, %v290
        %v294 = vsel %vm269, %v290, 0.0
        %v295 = vrot.slane %v294, 4
        %v296 = vadd.f32 %v294, %v295
        %v297 = vrot.slane %v296, 2
        %v298 = vadd.f32 %v296, %v297
        %v299 = vrot.slane %v298, 1
        %v300 = vadd.f32 %v298, %v299
        %v301 = vsel %vm269, %v292, 0.0
        %v302 = vrot.slane %v301, 4
        %v303 = vadd.f32 %v301, %v302
        %v304 = vrot.slane %v303, 2
        %v305 = vadd.f32 %v303, %v304
        %v306 = vrot.slane %v305, 1
        %v307 = vadd.f32 %v305, %v306
        %v308 = vrcp.pop %v300
        %v309 = vrcp.pop %v307
        %v312 = vcombine.low %v308, %v309
        %v314 = vmul.f32 %v290, %v312
        %v315 = vlaneseq
        %v316 = vshrl.u32 %v315, 7
        %v317 = vld [vmem:[%s217] sm:$0x3]
        %v318 = vlaneseq
        %v319 = vshrl.u32 %v318, 7
        %v320 = vsub.s32 0, %v319
        %v321 = vrot.slane %v317, %v320
        %v322 = vlaneseq
        %v323 = vshrl.u32 %v322, 7
        %v324 = vsub.s32 1, %v323
        %v325 = vrot.slane %v317, %v324
        %vm326 = vcmp.eq.s32.totalorder %v316, %v321
        %vm327 = vcmp.eq.s32.totalorder %v316, %v325
        %v329 = vcombine.high %v314, %v314
        %v331 = vsel %vm326, %v314, 0.0
        %v332 = vsel %vm327, %v329, 0.0
        %v333 = vadd.f32 %v314, 1.0
        %v335 = vcombine.high %v333, %v333
        %v337 = vsel %vm326, %v333, %v314
        %v338 = vsel %vm327, %v335, %v329
        %v339 = vld [vmem:[#allocation2] sm:$0xf]
        %v340 = vsel %vm269, %v331, 0.0
        %v341 = vsel %vm269, %v332, 0.0
        %v342 = vadd.f32 %v340, %v341
        %343 = vadd.xlane.f32.xlu0 %v342
        %v344 = vpop.xlane.xlu0 %343
        %v345 = vadd.f32 %v339, %v344
        %vm346 = vcmask 3072
        %347 = vst.msk [vmem:[#allocation2] sm:$0xf] %vm346, %v345
        %v348 = vld [vmem:[#allocation3] sm:$0xf]
        %v349 = vsel %vm269, %v337, 0.0
        %v350 = vsel %vm269, %v338, 0.0
        %v351 = vadd.f32 %v349, %v350
        %352 = vadd.xlane.f32.xlu0 %v351
        %v353 = vpop.xlane.xlu0 %352
        %v354 = vadd.f32 %v348, %v353
        %355 = vst.msk [vmem:[#allocation3] sm:$0xf] %vm346, %v354
        // Predicated region
        $region41: #{tpu_custom_call.1} parent=27 // pred_check
          %p356 = pneg %p258
        $region42: #{tpu_custom_call.1} parent=27 // pred_check_branch
          %358 = sbr.rel (%p356) target = $region44
        $region43: #{tpu_custom_call.1} parent=27 // pred_region
          %v359 = vld [vmem:[#allocation2] sm:$0xf]
          %360 = vst.msk [vmem:[%s253] sm:$0xf] %vm346, %v359
          %v361 = vld [vmem:[#allocation3] sm:$0xf]
          %362 = vst.msk [vmem:[%s257] sm:$0xf] %vm346, %v361
        $region44: #{tpu_custom_call.1} parent=27 // pred_fallthru
          _
        %p363 = scmp.lt.s32.totalorder %s25, 1
        %s364 = scalar_select %p363, %s25, 1
        %s365 = smul.addr %s364, 4
        %s366 = scalar_lea.vmem %s2, %s365
        %p367 = scmp.lt.s32.totalorder %s25, 1
        %s368 = scalar_select %p367, %s25, 1
        %s369 = smul.addr %s368, 4
        %s370 = scalar_lea.vmem %s3, %s369
        // Predicated region
        $region45: #{tpu_custom_call.1} parent=27 // pred_check
          %p371 = pneg %p107
        $region46: #{tpu_custom_call.1} parent=27 // pred_check_branch
          %373 = sbr.rel (%p371) target = $region48
        $region47: #{tpu_custom_call.1} parent=27 // pred_region
          _
        $region48: #{tpu_custom_call.1} parent=27 // pred_fallthru
          _
        // Predicated region
        $region49: #{tpu_custom_call.1} parent=27 // pred_check
          %p374 = pneg %p133
        $region50: #{tpu_custom_call.1} parent=27 // pred_check_branch
          %376 = sbr.rel (%p374) target = $region52
        $region51: #{tpu_custom_call.1} parent=27 // pred_region
          _
        $region52: #{tpu_custom_call.1} parent=27 // pred_fallthru
          _
      $region28: #{tpu_custom_call.1} parent=5 // pred_fallthru
        _
      %p377 = scmp.le.s32.totalorder 2, %s16
      // Predicated region
      $region53: #{tpu_custom_call.1} parent=5 // pred_check
        %p378 = pneg %p377
      $region54: #{tpu_custom_call.1} parent=5 // pred_check_branch
        %380 = sbr.rel (%p378) target = $region56
      $region55: #{tpu_custom_call.1} parent=5 // pred_region
        %s381 = ssub.s32 %s16, 2
        // Predicated region
        $region57: #{tpu_custom_call.1} parent=55 // pred_check
          %p382 = pneg %p113
        $region58: #{tpu_custom_call.1} parent=55 // pred_check_branch
          %384 = sbr.rel (%p382) target = $region60
        $region59: #{tpu_custom_call.1} parent=55 // pred_region
          %p385 = scmp.lt.s32.totalorder %s27, 1
          %s386 = scalar_select %p385, %s27, 1
          %s387 = smul.addr %s386, 4
          %s388 = scalar_lea.vmem %s2, %s387
        $region60: #{tpu_custom_call.1} parent=55 // pred_fallthru
          _
        // Predicated region
        $region61: #{tpu_custom_call.1} parent=55 // pred_check
          %p389 = pneg %p139
        $region62: #{tpu_custom_call.1} parent=55 // pred_check_branch
          %391 = sbr.rel (%p389) target = $region64
        $region63: #{tpu_custom_call.1} parent=55 // pred_region
          %p392 = scmp.lt.s32.totalorder %s27, 1
          %s393 = scalar_select %p392, %s27, 1
          %s394 = smul.addr %s393, 4
          %s395 = scalar_lea.vmem %s3, %s394
        $region64: #{tpu_custom_call.1} parent=55 // pred_fallthru
          _
      $region56: #{tpu_custom_call.1} parent=5 // pred_fallthru
        _
    $region6: #{tpu_custom_call.1} parent=1 // loop_footer
      %s20 = sadd.s32 1, %s16
    $region7: #{tpu_custom_call.1} parent=1 // loop_footer_branch
      %15 = sbr.rel target = $region3
    $region8: #{tpu_custom_call.1} parent=1 // loop_exit
      _
    %396 = vsyncpa [#allocation5], 1
    %s397 = scalar_lea.sflag [#allocation5], 1
    %398 = vsyncpa %s397, 1
    %399 = vsyncpa [#allocation7], 1
    %s400 = scalar_lea.sflag [#allocation7], 1
    %401 = vsyncpa %s400, 1

</llo_original>
